<compile_context>
chip_gen: v5e
topology: v5e:2x2
jax: 0.10.0
libtpu: 0.0.40
codegen_flags: <defaults>
</compile_context>

<pallas_src>
import functools

import jax
import jax.numpy as jnp
import numpy as np
from jax.experimental import pallas as pl
from jax.experimental.pallas import tpu as pltpu


def _dot_last_axis(x, w):
    """sum(x * w) over the trailing H axis.

    For H > 128 (and H % 128 == 0) the reduction is chunked: elementwise VPU
    accumulation across 128-lane chunks, then a single 128-lane cross-lane
    reduce, instead of one full-H XLU reduce.
    """
    H = x.shape[-1]
    if H > 128 and H % 128 == 0:
        acc = x[..., :128] * w[:128]
        for c in range(1, H // 128):
            acc = acc + x[..., c * 128:(c + 1) * 128] * w[c * 128:(c + 1) * 128]
        return jnp.sum(acc, axis=-1)
    return jnp.sum(x * w, axis=-1)


def _attention_kernel(hid_ref,   # VMEM (TB, H)        decoder hidden rows
                      enc_ref,   # VMEM (TB, Sp, H)    encoder outputs (S padded)
                      wh_ref,    # VMEM (1, H)         weights paired with hidden
                      we_ref,    # VMEM (1, H)         weights paired with enc_outs
                      b_ref,     # SMEM (1, 1)         linear bias
                      out_ref,   # VMEM (TB, Sp)       attention weights
                      *, s_valid, b_valid, tb):
    bias = b_ref[0, 0]
    TB, Sp, _ = enc_ref.shape

    # hidden contribution (constant over source positions): (TB, 1)
    score_h = _dot_last_axis(hid_ref[...], wh_ref[0, :])[:, None]
    # encoder contribution: (TB, Sp)
    score_e = _dot_last_axis(enc_ref[...], we_ref[0, :])

    energy = jnp.tanh(score_e + score_h + bias)

    # Mask S-padding lanes out of the softmax (static no-op when S == Sp).
    if s_valid != Sp:
        lane = jax.lax.broadcasted_iota(jnp.int32, (TB, Sp), 1)
        energy = jnp.where(lane < s_valid, energy, jnp.float32(-1e30))

    # Neutralize ragged-tail batch rows (kept finite; discarded on writeback).
    if b_valid % tb != 0:
        row = pl.program_id(0) * tb + jax.lax.broadcasted_iota(jnp.int32, (TB, Sp), 0)
        energy = jnp.where(row < b_valid, energy, jnp.float32(0.0))

    # Numerically-stable softmax over the (lane-dense) source axis.
    m = jnp.max(energy, axis=1, keepdims=True)
    e = jnp.exp(energy - m)
    denom = jnp.sum(e, axis=1, keepdims=True)
    out_ref[...] = e * pl.reciprocal(denom, approx=False)   # EUP recip + broadcast mul


def _choose_tb(B, S_pad, H):
    """Batch-tile size derived from the actual per-core VMEM of this chip."""
    try:
        vmem_phys = int(pltpu.get_tpu_info().vmem_capacity_bytes)
    except Exception:
        vmem_phys = 64 * 1024 * 1024          # conservative default (v7x per-TC VMEM)
    budget = int(vmem_phys * 0.4)             # pipelined working-set budget

    # Per batch row: double-buffered enc block + double-buffered out block + hid.
    row_bytes = 4 * (2 * S_pad * H + 2 * S_pad + 2 * H)

    if B <= 8:
        tb = B                                # full batch dim satisfies the sublane rule
    else:
        tb = min(B, max(8, budget // row_bytes))
        tb = max(8, (tb // 8) * 8)            # rows are the sublane dim of hid/out blocks
        if B >= 16:                           # guarantee >=2 grid steps (v7x megacore)
            half = max(8, (pl.cdiv(B, 2) // 8) * 8)
            tb = min(tb, half)
    return tb, vmem_phys, row_bytes


@jax.jit
def _attention_pallas(hidden, enc_outs, w, b):
    """Pallas path of Attention.forward(hidden, enc_outs) -> (B, S) weights."""
    B, S, H = enc_outs.shape
    assert hidden.shape == (1, B, H), "expected decoder hidden of shape (1, B, H)"

    hid2 = jnp.asarray(hidden, jnp.float32).reshape(B, H)      # permute(1,0,2).squeeze
    enc = jnp.asarray(enc_outs, jnp.float32)
    w_flat = jnp.asarray(w, jnp.float32).reshape(2 * H)
    w_hid = w_flat[:H].reshape(1, H)                           # pairs with hidden half
    w_enc = w_flat[H:].reshape(1, H)                           # pairs with enc_outs half
    b2 = jnp.asarray(b, jnp.float32).reshape(1, 1)

    # Lane-dense energy/output: pad S to a multiple of 128 (no-op at prod S % 128 == 0).
    S_pad = ((S + 127) // 128) * 128
    if S_pad != S:
        enc = jnp.pad(enc, ((0, 0), (0, S_pad - S), (0, 0)))

    TB, vmem_phys, row_bytes = _choose_tb(B, S_pad, H)
    grid = (pl.cdiv(B, TB),)

    est_bytes = TB * row_bytes + 16 * H + (1 << 20)            # blocks + weights + slack
    vmem_limit = int(min(vmem_phys * 0.9,
                         max(2 * est_bytes, 32 * 1024 * 1024)))

    kernel = functools.partial(_attention_kernel, s_valid=S, b_valid=B, tb=TB)

    weights = pl.pallas_call(
        kernel,
        out_shape=jax.ShapeDtypeStruct((B, S_pad), jnp.float32),
        grid=grid,
        in_specs=[
            pl.BlockSpec((TB, H), lambda i: (i, 0)),             # hidden rows
            pl.BlockSpec((TB, S_pad, H), lambda i: (i, 0, 0)),   # encoder outputs
            pl.BlockSpec((1, H), lambda i: (0, 0)),              # w_hid (resident)
            pl.BlockSpec((1, H), lambda i: (0, 0)),              # w_enc (resident)
            pl.BlockSpec(memory_space=pltpu.MemorySpace.SMEM),   # scalar bias
        ],
        out_specs=pl.BlockSpec((TB, S_pad), lambda i: (i, 0)),   # lane-dense store
        compiler_params=pltpu.CompilerParams(
            dimension_semantics=("parallel",),                   # batch tiles independent
            vmem_limit_bytes=vmem_limit),
    )(hid2, enc, w_hid, w_enc, b2)

    return weights[:, :S]


def _reference_forward(hidden, enc_outs, w, b):
    """Pure-JAX reference with PyTorch semantics (also the tiny-shape fallback)."""
    B, S, H = enc_outs.shape
    hid = jnp.transpose(hidden, (1, 0, 2))                     # (B, 1, H)
    hid = jnp.broadcast_to(hid, (B, S, H))                     # .repeat(1, S, 1)
    cat = jnp.concatenate([hid, enc_outs], axis=2)             # (B, S, 2H)
    energy = jnp.tanh(jnp.einsum('bsk,ok->bso', cat, w) + b)   # (B, S, 1)
    return jax.nn.softmax(energy[..., 0], axis=1)              # (B, S)


def attention_forward(hidden, enc_outs, w, b, *, use_pallas=None):
    """Mirrors Attention.forward.  Dispatches the Pallas kernel only when the
    problem is big enough for the launch/pipeline fixed cost to pay off."""
    B, S, H = enc_outs.shape
    if use_pallas is None:
        use_pallas = (B * S * H * 4) >= (2 << 20)              # >= 2 MiB of enc_outs
    if not use_pallas:
        return _reference_forward(hidden, enc_outs, w, b)
    return _attention_pallas(hidden, enc_outs, w, b)


if __name__ == "__main__":
    H = 32        # hid_dim
    B, S = 2, 8   # batch, source sequence length

    key = jax.random.PRNGKey(0)
    k_hid, k_enc, k_w, k_b = jax.random.split(key, 4)

    hidden = jax.random.normal(k_hid, (1, B, H), jnp.float32)
    enc_outs = jax.random.normal(k_enc, (B, S, H), jnp.float32)
    bound = 1.0 / np.sqrt(2 * H)                               # PyTorch Linear init range
    w = jax.random.uniform(k_w, (1, 2 * H), jnp.float32, -bound, bound)
    b = jax.random.uniform(k_b, (1,), jnp.float32, -bound, bound)

    # Force the Pallas path so the kernel itself is exercised at demo size.
    weights = attention_forward(hidden, enc_outs, w, b, use_pallas=True)
    weights = jax.block_until_ready(weights)

    ref = _reference_forward(hidden, enc_outs, w, b)

    assert weights.shape == (B, S)
    np.testing.assert_allclose(np.asarray(weights), np.asarray(ref),
                               atol=1e-5, rtol=1e-5)
    np.testing.assert_allclose(np.asarray(weights).sum(axis=1),
                               np.ones(B, np.float32), atol=1e-5, rtol=1e-5)

    print("KERNEL_OK")
</pallas_src>

<mosaic_0001>
module attributes {stable_mosaic.version = 11 : i64} {
  func.func @_attention_kernel(%arg0: i32, %arg1: memref<2x32xf32, #tpu.memory_space<vmem>>, %arg2: memref<2x128x32xf32, #tpu.memory_space<vmem>>, %arg3: memref<1x32xf32, #tpu.memory_space<vmem>>, %arg4: memref<1x32xf32, #tpu.memory_space<vmem>>, %arg5: memref<1x1xf32, #tpu.memory_space<smem>>, %arg6: memref<2x128xf32, #tpu.memory_space<vmem>>) attributes {dimension_semantics = [#tpu.dimension_semantics<parallel>], iteration_bounds = array<i64: 1>, scalar_prefetch = 0 : i64, scratch_operands = 0 : i64, tpu.core_type = #tpu.core_type<tc>, window_params = [{transform_indices = @transform_0, window_bounds = array<i64: 2, 32>}, {transform_indices = @transform_1, window_bounds = array<i64: 2, 128, 32>}, {pipeline_mode = #tpu.pipeline_mode<synchronous>, transform_indices = @transform_2, window_bounds = array<i64: 1, 32>}, {pipeline_mode = #tpu.pipeline_mode<synchronous>, transform_indices = @transform_3, window_bounds = array<i64: 1, 32>}, {transform_indices = @transform_4, window_bounds = array<i64: 1, 1>}, {transform_indices = @transform_5, window_bounds = array<i64: 2, 128>}]} {
    %c0 = arith.constant 0 : index
    %c0_0 = arith.constant 0 : index
    %0 = memref.load %arg5[%c0, %c0_0] : memref<1x1xf32, #tpu.memory_space<smem>>
    %c0_1 = arith.constant 0 : index
    %c0_2 = arith.constant 0 : index
    %1 = vector.load %arg1[%c0_1, %c0_2] : memref<2x32xf32, #tpu.memory_space<vmem>>, vector<2x32xf32>
    %c0_3 = arith.constant 0 : index
    %c0_4 = arith.constant 0 : index
    %2 = vector.load %arg3[%c0_3, %c0_4] : memref<1x32xf32, #tpu.memory_space<vmem>>, vector<1x32xf32>
    %3 = vector.shape_cast %2 : vector<1x32xf32> to vector<32xf32>
    %4 = vector.shape_cast %3 : vector<32xf32> to vector<1x32xf32>
    %5 = vector.broadcast %4 : vector<1x32xf32> to vector<2x32xf32>
    %6 = arith.mulf %1, %5 : vector<2x32xf32>
    %cst = arith.constant dense<0.000000e+00> : vector<2xf32>
    %7 = vector.multi_reduction <add>, %6, %cst [1] : vector<2x32xf32> to vector<2xf32>
    %8 = vector.shape_cast %7 : vector<2xf32> to vector<2x1xf32>
    %c0_5 = arith.constant 0 : index
    %c0_6 = arith.constant 0 : index
    %c0_7 = arith.constant 0 : index
    %9 = vector.load %arg2[%c0_5, %c0_6, %c0_7] : memref<2x128x32xf32, #tpu.memory_space<vmem>>, vector<2x128x32xf32>
    %c0_8 = arith.constant 0 : index
    %c0_9 = arith.constant 0 : index
    %10 = vector.load %arg4[%c0_8, %c0_9] : memref<1x32xf32, #tpu.memory_space<vmem>>, vector<1x32xf32>
    %11 = vector.shape_cast %10 : vector<1x32xf32> to vector<32xf32>
    %12 = vector.shape_cast %11 : vector<32xf32> to vector<1x1x32xf32>
    %13 = vector.broadcast %12 : vector<1x1x32xf32> to vector<2x128x32xf32>
    %14 = arith.mulf %9, %13 : vector<2x128x32xf32>
    %cst_10 = arith.constant dense<0.000000e+00> : vector<2x128xf32>
    %15 = vector.multi_reduction <add>, %14, %cst_10 [2] : vector<2x128x32xf32> to vector<2x128xf32>
    %16 = vector.broadcast %8 : vector<2x1xf32> to vector<2x128xf32>
    %17 = arith.addf %15, %16 : vector<2x128xf32>
    %18 = vector.broadcast %0 : f32 to vector<2x128xf32>
    %19 = arith.addf %17, %18 : vector<2x128xf32>
    %20 = math.tanh %19 : vector<2x128xf32>
    %21 = tpu.iota {dimensions = array<i32: 1>} : vector<2x128xi32>
    %c8_i32 = arith.constant 8 : i32
    %22 = vector.broadcast %c8_i32 : i32 to vector<2x128xi32>
    %23 = arith.cmpi slt, %21, %22 : vector<2x128xi32>
    %cst_11 = arith.constant -1.000000e+30 : f32
    %24 = vector.broadcast %cst_11 : f32 to vector<2x128xf32>
    %25 = arith.select %23, %20, %24 : vector<2x128xi1>, vector<2x128xf32>
    %cst_12 = arith.constant dense<0xFF800000> : vector<2xf32>
    %26 = vector.multi_reduction <maximumf>, %25, %cst_12 [1] : vector<2x128xf32> to vector<2xf32>
    %27 = vector.shape_cast %26 : vector<2xf32> to vector<2x1xf32>
    %28 = vector.broadcast %27 : vector<2x1xf32> to vector<2x128xf32>
    %29 = arith.subf %25, %28 : vector<2x128xf32>
    %30 = math.exp %29 : vector<2x128xf32>
    %cst_13 = arith.constant dense<0.000000e+00> : vector<2xf32>
    %31 = vector.multi_reduction <add>, %30, %cst_13 [1] : vector<2x128xf32> to vector<2xf32>
    %32 = vector.shape_cast %31 : vector<2xf32> to vector<2x1xf32>
    %33 = tpu.reciprocal %32 : vector<2x1xf32> -> vector<2x1xf32>
    %34 = vector.broadcast %33 : vector<2x1xf32> to vector<2x128xf32>
    %35 = arith.mulf %30, %34 : vector<2x128xf32>
    %c0_14 = arith.constant 0 : index
    %c0_15 = arith.constant 0 : index
    %36 = vector.load %arg6[%c0_14, %c0_15] : memref<2x128xf32, #tpu.memory_space<vmem>>, vector<2x128xf32>
    tpu.vector_store %arg6[%c0_14, %c0_15], %35 {strides = array<i32>} : memref<2x128xf32, #tpu.memory_space<vmem>>, vector<2x128xf32>,
    return
  }
  func.func @transform_0(%arg0: i32) -> (i32, i32) {
    %c0_i32 = arith.constant 0 : i32
    %c0_i32_0 = arith.constant 0 : i32
    return %arg0, %c0_i32 : i32, i32
  }
  func.func @transform_1(%arg0: i32) -> (i32, i32, i32) {
    %c0_i32 = arith.constant 0 : i32
    %c0_i32_0 = arith.constant 0 : i32
    %c0_i32_1 = arith.constant 0 : i32
    return %arg0, %c0_i32, %c0_i32_0 : i32, i32, i32
  }
  func.func @transform_2(%arg0: i32) -> (i32, i32) {
    %c0_i32 = arith.constant 0 : i32
    %c0_i32_0 = arith.constant 0 : i32
    %c0_i32_1 = arith.constant 0 : i32
    return %c0_i32, %c0_i32_0 : i32, i32
  }
  func.func @transform_3(%arg0: i32) -> (i32, i32) {
    %c0_i32 = arith.constant 0 : i32
    %c0_i32_0 = arith.constant 0 : i32
    %c0_i32_1 = arith.constant 0 : i32
    return %c0_i32, %c0_i32_0 : i32, i32
  }
  func.func @transform_4(%arg0: i32) -> (i32, i32) {
    %c0_i32 = arith.constant 0 : i32
    %c0_i32_0 = arith.constant 0 : i32
    %c0_i32_1 = arith.constant 0 : i32
    return %c0_i32, %c0_i32_0 : i32, i32
  }
  func.func @transform_5(%arg0: i32) -> (i32, i32) {
    %c0_i32 = arith.constant 0 : i32
    %c0_i32_0 = arith.constant 0 : i32
    return %arg0, %c0_i32 : i32, i32
  }
}

</mosaic_0001>

<llo_original>
// kernel: _attention_pallas.1
$region0: #{_attention_pallas.1}
  #allocation0 [shape = 'u32[]', space=smem, size = 0x4, offset = 0x4, fixed_abs, tag = 'smem constant byte address 0x4 - core index']
  #allocation1 [shape = 'u32[72,128]{1,0:T(1,128)}', space=vmem, size = 0x9000, scoped, tag = 'internal scratch']
  #allocation2 [shape = 'f32[1,1]{1,0:T(1,128)S(6)}', space=smem, size = 0x200, scoped, tag = 'scoped memory for _attention_pallas.1']
  %s0 = inlined_call_operand.vmem [shape: f32[2,32], index: 0, kind: input, shape index: {}]
  %s1 = inlined_call_operand.vmem [shape: f32[2,128,32], index: 1, kind: input, shape index: {}]
  %s2 = inlined_call_operand.vmem [shape: f32[1,32], index: 2, kind: input, shape index: {}]
  %s3 = inlined_call_operand.vmem [shape: f32[1,32], index: 3, kind: input, shape index: {}]
  %s4 = inlined_call_operand.<no memory space> [shape: f32[1,1], index: 4, kind: input, shape index: {}]
  %s5 = inlined_call_operand.hbm [shape: f32[2,128], index: 5, kind: output, shape index: {}]
  %s6 = sld [smem:[#allocation0]]
  $region30: #{_attention_pallas.1} parent=0
    _
  %s8 = ssub.s32 1, %s6
  %s9 = scalar_select 0, %s8, %s6
  %10 = sst [smem:[#allocation2]] %s4
  $region1: #{_attention_pallas.1} parent=0
    #allocation3 [shape = 'u8[1024]{0}', space=vmem, size = 0x400, scoped, tag = 'output window, operand 0, single buffered']
    #allocation4 [shape = 's32[1]{0}', space=sflag, size = 0x4, scoped, tag = 'scoped memory for _attention_pallas.1']
    %11 = vsyncpa [#allocation4], 0
    // Predicated region
    $region2: #{_attention_pallas.1} parent=1 // pred_check
      _
    $region3: #{_attention_pallas.1} parent=1 // pred_check_branch
      %13 = sbr.rel (0) target = $region5
    $region4: #{_attention_pallas.1} parent=1 // pred_region
      _
    $region5: #{_attention_pallas.1} parent=1 // pred_fallthru
      _
    // Predicated region
    $region6: #{_attention_pallas.1} parent=1 // pred_check
      _
    $region7: #{_attention_pallas.1} parent=1 // pred_check_branch
      %15 = sbr.rel (0) target = $region9
    $region8: #{_attention_pallas.1} parent=1 // pred_region
      _
    $region9: #{_attention_pallas.1} parent=1 // pred_fallthru
      _
    // Predicated region
    $region10: #{_attention_pallas.1} parent=1 // pred_check
      _
    $region11: #{_attention_pallas.1} parent=1 // pred_check_branch
      %17 = sbr.rel (0) target = $region13
    $region12: #{_attention_pallas.1} parent=1 // pred_region
      _
    $region13: #{_attention_pallas.1} parent=1 // pred_fallthru
      _
    // Predicated region
    $region14: #{_attention_pallas.1} parent=1 // pred_check
      _
    $region15: #{_attention_pallas.1} parent=1 // pred_check_branch
      %19 = sbr.rel (0) target = $region17
    $region16: #{_attention_pallas.1} parent=1 // pred_region
      _
    $region17: #{_attention_pallas.1} parent=1 // pred_fallthru
      _
    // Predicated region
    $region18: #{_attention_pallas.1} parent=1 // pred_check
      _
    $region19: #{_attention_pallas.1} parent=1 // pred_check_branch
      %21 = sbr.rel (0) target = $region21
    $region20: #{_attention_pallas.1} parent=1 // pred_region
      _
    $region21: #{_attention_pallas.1} parent=1 // pred_fallthru
      _
    %s22 = sld [smem:[#allocation2]]
    %v23 = vld [vmem:[%s0] sm:$0x3]
    %v24 = vld [vmem:[%s2] sm:$0x1]
    %v26 = vperm.slane %v24, 0
    %v28 = vmul.f32 %v23, %v26
    %vm29 = vcmask 254976
    %v30 = vsel %vm29, %v28, 0.0
    %31 = vadd.xlane.f32.xlu0 %v30
    %v32 = vpop.xlane.xlu0 %31
    %v33 = vld [vmem:[%s1] sm:$0xff]
    %v34 = vld [vmem:[%s1 + $0x8] sm:$0xff]
    %v35 = vld [vmem:[%s1 + $0x10] sm:$0xff]
    %v36 = vld [vmem:[%s1 + $0x18] sm:$0xff]
    %v37 = vld [vmem:[%s1 + $0x20] sm:$0xff]
    %v38 = vld [vmem:[%s1 + $0x28] sm:$0xff]
    %v39 = vld [vmem:[%s1 + $0x30] sm:$0xff]
    %v40 = vld [vmem:[%s1 + $0x38] sm:$0xff]
    %v41 = vld [vmem:[%s1 + $0x40] sm:$0xff]
    %v42 = vld [vmem:[%s1 + $0x48] sm:$0xff]
    %v43 = vld [vmem:[%s1 + $0x50] sm:$0xff]
    %v44 = vld [vmem:[%s1 + $0x58] sm:$0xff]
    %v45 = vld [vmem:[%s1 + $0x60] sm:$0xff]
    %v46 = vld [vmem:[%s1 + $0x68] sm:$0xff]
    %v47 = vld [vmem:[%s1 + $0x70] sm:$0xff]
    %v48 = vld [vmem:[%s1 + $0x78] sm:$0xff]
    %v49 = vld [vmem:[%s1 + $0x80] sm:$0xff]
    %v50 = vld [vmem:[%s1 + $0x88] sm:$0xff]
    %v51 = vld [vmem:[%s1 + $0x90] sm:$0xff]
    %v52 = vld [vmem:[%s1 + $0x98] sm:$0xff]
    %v53 = vld [vmem:[%s1 + $0xa0] sm:$0xff]
    %v54 = vld [vmem:[%s1 + $0xa8] sm:$0xff]
    %v55 = vld [vmem:[%s1 + $0xb0] sm:$0xff]
    %v56 = vld [vmem:[%s1 + $0xb8] sm:$0xff]
    %v57 = vld [vmem:[%s1 + $0xc0] sm:$0xff]
    %v58 = vld [vmem:[%s1 + $0xc8] sm:$0xff]
    %v59 = vld [vmem:[%s1 + $0xd0] sm:$0xff]
    %v60 = vld [vmem:[%s1 + $0xd8] sm:$0xff]
    %v61 = vld [vmem:[%s1 + $0xe0] sm:$0xff]
    %v62 = vld [vmem:[%s1 + $0xe8] sm:$0xff]
    %v63 = vld [vmem:[%s1 + $0xf0] sm:$0xff]
    %v64 = vld [vmem:[%s1 + $0xf8] sm:$0xff]
    %v65 = vld [vmem:[%s3] sm:$0x1]
    %v67 = vperm.slane %v65, 0
    %v69 = vmul.f32 %v33, %v67
    %v70 = vmul.f32 %v34, %v67
    %v71 = vmul.f32 %v35, %v67
    %v72 = vmul.f32 %v36, %v67
    %v73 = vmul.f32 %v37, %v67
    %v74 = vmul.f32 %v38, %v67
    %v75 = vmul.f32 %v39, %v67
    %v76 = vmul.f32 %v40, %v67
    %v77 = vmul.f32 %v41, %v67
    %v78 = vmul.f32 %v42, %v67
    %v79 = vmul.f32 %v43, %v67
    %v80 = vmul.f32 %v44, %v67
    %v81 = vmul.f32 %v45, %v67
    %v82 = vmul.f32 %v46, %v67
    %v83 = vmul.f32 %v47, %v67
    %v84 = vmul.f32 %v48, %v67
    %v85 = vmul.f32 %v49, %v67
    %v86 = vmul.f32 %v50, %v67
    %v87 = vmul.f32 %v51, %v67
    %v88 = vmul.f32 %v52, %v67
    %v89 = vmul.f32 %v53, %v67
    %v90 = vmul.f32 %v54, %v67
    %v91 = vmul.f32 %v55, %v67
    %v92 = vmul.f32 %v56, %v67
    %v93 = vmul.f32 %v57, %v67
    %v94 = vmul.f32 %v58, %v67
    %v95 = vmul.f32 %v59, %v67
    %v96 = vmul.f32 %v60, %v67
    %v97 = vmul.f32 %v61, %v67
    %v98 = vmul.f32 %v62, %v67
    %v99 = vmul.f32 %v63, %v67
    %v100 = vmul.f32 %v64, %v67
    %vm101 = vcmask 261120
    %v102 = vsel %vm101, %v69, 0.0
    %103 = vadd.xlane.f32.xlu0 %v102
    %v104 = vpop.xlane.xlu0 %103
    %v105 = vsel %vm101, %v70, 0.0
    %106 = vadd.xlane.f32.xlu0 %v105
    %v107 = vpop.xlane.xlu0 %106
    %v108 = vsel %vm101, %v71, 0.0
    %109 = vadd.xlane.f32.xlu0 %v108
    %v110 = vpop.xlane.xlu0 %109
    %v111 = vsel %vm101, %v72, 0.0
    %112 = vadd.xlane.f32.xlu0 %v111
    %v113 = vpop.xlane.xlu0 %112
    %v114 = vsel %vm101, %v73, 0.0
    %115 = vadd.xlane.f32.xlu0 %v114
    %v116 = vpop.xlane.xlu0 %115
    %v117 = vsel %vm101, %v74, 0.0
    %118 = vadd.xlane.f32.xlu0 %v117
    %v119 = vpop.xlane.xlu0 %118
    %v120 = vsel %vm101, %v75, 0.0
    %121 = vadd.xlane.f32.xlu0 %v120
    %v122 = vpop.xlane.xlu0 %121
    %v123 = vsel %vm101, %v76, 0.0
    %124 = vadd.xlane.f32.xlu0 %v123
    %v125 = vpop.xlane.xlu0 %124
    %v126 = vsel %vm101, %v77, 0.0
    %127 = vadd.xlane.f32.xlu0 %v126
    %v128 = vpop.xlane.xlu0 %127
    %v129 = vsel %vm101, %v78, 0.0
    %130 = vadd.xlane.f32.xlu0 %v129
    %v131 = vpop.xlane.xlu0 %130
    %v132 = vsel %vm101, %v79, 0.0
    %133 = vadd.xlane.f32.xlu0 %v132
    %v134 = vpop.xlane.xlu0 %133
    %v135 = vsel %vm101, %v80, 0.0
    %136 = vadd.xlane.f32.xlu0 %v135
    %v137 = vpop.xlane.xlu0 %136
    %v138 = vsel %vm101, %v81, 0.0
    %139 = vadd.xlane.f32.xlu0 %v138
    %v140 = vpop.xlane.xlu0 %139
    %v141 = vsel %vm101, %v82, 0.0
    %142 = vadd.xlane.f32.xlu0 %v141
    %v143 = vpop.xlane.xlu0 %142
    %v144 = vsel %vm101, %v83, 0.0
    %145 = vadd.xlane.f32.xlu0 %v144
    %v146 = vpop.xlane.xlu0 %145
    %v147 = vsel %vm101, %v84, 0.0
    %148 = vadd.xlane.f32.xlu0 %v147
    %v149 = vpop.xlane.xlu0 %148
    %v150 = vsel %vm101, %v85, 0.0
    %151 = vadd.xlane.f32.xlu0 %v150
    %v152 = vpop.xlane.xlu0 %151
    %v153 = vsel %vm101, %v86, 0.0
    %154 = vadd.xlane.f32.xlu0 %v153
    %v155 = vpop.xlane.xlu0 %154
    %v156 = vsel %vm101, %v87, 0.0
    %157 = vadd.xlane.f32.xlu0 %v156
    %v158 = vpop.xlane.xlu0 %157
    %v159 = vsel %vm101, %v88, 0.0
    %160 = vadd.xlane.f32.xlu0 %v159
    %v161 = vpop.xlane.xlu0 %160
    %v162 = vsel %vm101, %v89, 0.0
    %163 = vadd.xlane.f32.xlu0 %v162
    %v164 = vpop.xlane.xlu0 %163
    %v165 = vsel %vm101, %v90, 0.0
    %166 = vadd.xlane.f32.xlu0 %v165
    %v167 = vpop.xlane.xlu0 %166
    %v168 = vsel %vm101, %v91, 0.0
    %169 = vadd.xlane.f32.xlu0 %v168
    %v170 = vpop.xlane.xlu0 %169
    %v171 = vsel %vm101, %v92, 0.0
    %172 = vadd.xlane.f32.xlu0 %v171
    %v173 = vpop.xlane.xlu0 %172
    %v174 = vsel %vm101, %v93, 0.0
    %175 = vadd.xlane.f32.xlu0 %v174
    %v176 = vpop.xlane.xlu0 %175
    %v177 = vsel %vm101, %v94, 0.0
    %178 = vadd.xlane.f32.xlu0 %v177
    %v179 = vpop.xlane.xlu0 %178
    %v180 = vsel %vm101, %v95, 0.0
    %181 = vadd.xlane.f32.xlu0 %v180
    %v182 = vpop.xlane.xlu0 %181
    %v183 = vsel %vm101, %v96, 0.0
    %184 = vadd.xlane.f32.xlu0 %v183
    %v185 = vpop.xlane.xlu0 %184
    %v186 = vsel %vm101, %v97, 0.0
    %187 = vadd.xlane.f32.xlu0 %v186
    %v188 = vpop.xlane.xlu0 %187
    %v189 = vsel %vm101, %v98, 0.0
    %190 = vadd.xlane.f32.xlu0 %v189
    %v191 = vpop.xlane.xlu0 %190
    %v192 = vsel %vm101, %v99, 0.0
    %193 = vadd.xlane.f32.xlu0 %v192
    %v194 = vpop.xlane.xlu0 %193
    %v195 = vsel %vm101, %v100, 0.0
    %196 = vadd.xlane.f32.xlu0 %v195
    %v197 = vpop.xlane.xlu0 %196
    %v199 = vperm.slane %v32, 0
    %v200 = vperm.slane %v32, 1
    %v203 = vadd.f32 %v104, %v199
    %v204 = vadd.f32 %v107, %v199
    %v205 = vadd.f32 %v110, %v199
    %v206 = vadd.f32 %v113, %v199
    %v207 = vadd.f32 %v116, %v199
    %v208 = vadd.f32 %v119, %v199
    %v209 = vadd.f32 %v122, %v199
    %v210 = vadd.f32 %v125, %v199
    %v211 = vadd.f32 %v128, %v199
    %v212 = vadd.f32 %v131, %v199
    %v213 = vadd.f32 %v134, %v199
    %v214 = vadd.f32 %v137, %v199
    %v215 = vadd.f32 %v140, %v199
    %v216 = vadd.f32 %v143, %v199
    %v217 = vadd.f32 %v146, %v199
    %v218 = vadd.f32 %v149, %v199
    %v219 = vadd.f32 %v152, %v200
    %v220 = vadd.f32 %v155, %v200
    %v221 = vadd.f32 %v158, %v200
    %v222 = vadd.f32 %v161, %v200
    %v223 = vadd.f32 %v164, %v200
    %v224 = vadd.f32 %v167, %v200
    %v225 = vadd.f32 %v170, %v200
    %v226 = vadd.f32 %v173, %v200
    %v227 = vadd.f32 %v176, %v200
    %v228 = vadd.f32 %v179, %v200
    %v229 = vadd.f32 %v182, %v200
    %v230 = vadd.f32 %v185, %v200
    %v231 = vadd.f32 %v188, %v200
    %v232 = vadd.f32 %v191, %v200
    %v233 = vadd.f32 %v194, %v200
    %v234 = vadd.f32 %v197, %v200
    %v235 = vstv %s22
    %v236 = vadd.f32 %v203, %v235
    %v237 = vadd.f32 %v204, %v235
    %v238 = vadd.f32 %v205, %v235
    %v239 = vadd.f32 %v206, %v235
    %v240 = vadd.f32 %v207, %v235
    %v241 = vadd.f32 %v208, %v235
    %v242 = vadd.f32 %v209, %v235
    %v243 = vadd.f32 %v210, %v235
    %v244 = vadd.f32 %v211, %v235
    %v245 = vadd.f32 %v212, %v235
    %v246 = vadd.f32 %v213, %v235
    %v247 = vadd.f32 %v214, %v235
    %v248 = vadd.f32 %v215, %v235
    %v249 = vadd.f32 %v216, %v235
    %v250 = vadd.f32 %v217, %v235
    %v251 = vadd.f32 %v218, %v235
    %v252 = vadd.f32 %v219, %v235
    %v253 = vadd.f32 %v220, %v235
    %v254 = vadd.f32 %v221, %v235
    %v255 = vadd.f32 %v222, %v235
    %v256 = vadd.f32 %v223, %v235
    %v257 = vadd.f32 %v224, %v235
    %v258 = vadd.f32 %v225, %v235
    %v259 = vadd.f32 %v226, %v235
    %v260 = vadd.f32 %v227, %v235
    %v261 = vadd.f32 %v228, %v235
    %v262 = vadd.f32 %v229, %v235
    %v263 = vadd.f32 %v230, %v235
    %v264 = vadd.f32 %v231, %v235
    %v265 = vadd.f32 %v232, %v235
    %v266 = vadd.f32 %v233, %v235
    %v267 = vadd.f32 %v234, %v235
    %v268 = vtanh.pop %v236
    %v269 = vtanh.pop %v237
    %v270 = vtanh.pop %v238
    %v271 = vtanh.pop %v239
    %v272 = vtanh.pop %v240
    %v273 = vtanh.pop %v241
    %v274 = vtanh.pop %v242
    %v275 = vtanh.pop %v243
    %v276 = vtanh.pop %v244
    %v277 = vtanh.pop %v245
    %v278 = vtanh.pop %v246
    %v279 = vtanh.pop %v247
    %v280 = vtanh.pop %v248
    %v281 = vtanh.pop %v249
    %v282 = vtanh.pop %v250
    %v283 = vtanh.pop %v251
    %v284 = vtanh.pop %v252
    %v285 = vtanh.pop %v253
    %v286 = vtanh.pop %v254
    %v287 = vtanh.pop %v255
    %v288 = vtanh.pop %v256
    %v289 = vtanh.pop %v257
    %v290 = vtanh.pop %v258
    %v291 = vtanh.pop %v259
    %v292 = vtanh.pop %v260
    %v293 = vtanh.pop %v261
    %v294 = vtanh.pop %v262
    %v295 = vtanh.pop %v263
    %v296 = vtanh.pop %v264
    %v297 = vtanh.pop %v265
    %v298 = vtanh.pop %v266
    %v299 = vtanh.pop %v267
    %v300 = vlaneseq
    %v301 = vand.u32 %v300, 127
    %vm302 = vcmp.lt.s32.totalorder %v301, 8
    %335 = vset.pattern.permute.xlu0 0
    %336 = vperm.xlu0 %335, %v268
    %v337 = vpop.permute.xlu0 %336
    %338 = vset.pattern.permute.xlu0 0
    %339 = vperm.xlu0 %338, %v269
    %v340 = vpop.permute.xlu0 %339
    %341 = vset.pattern.permute.xlu0 0
    %342 = vperm.xlu0 %341, %v270
    %v343 = vpop.permute.xlu0 %342
    %344 = vset.pattern.permute.xlu0 0
    %345 = vperm.xlu0 %344, %v271
    %v346 = vpop.permute.xlu0 %345
    %347 = vset.pattern.permute.xlu0 0
    %348 = vperm.xlu0 %347, %v272
    %v349 = vpop.permute.xlu0 %348
    %350 = vset.pattern.permute.xlu0 0
    %351 = vperm.xlu0 %350, %v273
    %v352 = vpop.permute.xlu0 %351
    %353 = vset.pattern.permute.xlu0 0
    %354 = vperm.xlu0 %353, %v274
    %v355 = vpop.permute.xlu0 %354
    %356 = vset.pattern.permute.xlu0 0
    %357 = vperm.xlu0 %356, %v275
    %v358 = vpop.permute.xlu0 %357
    %359 = vset.pattern.permute.xlu0 0
    %360 = vperm.xlu0 %359, %v276
    %v361 = vpop.permute.xlu0 %360
    %362 = vset.pattern.permute.xlu0 0
    %363 = vperm.xlu0 %362, %v277
    %v364 = vpop.permute.xlu0 %363
    %365 = vset.pattern.permute.xlu0 0
    %366 = vperm.xlu0 %365, %v278
    %v367 = vpop.permute.xlu0 %366
    %368 = vset.pattern.permute.xlu0 0
    %369 = vperm.xlu0 %368, %v279
    %v370 = vpop.permute.xlu0 %369
    %371 = vset.pattern.permute.xlu0 0
    %372 = vperm.xlu0 %371, %v280
    %v373 = vpop.permute.xlu0 %372
    %374 = vset.pattern.permute.xlu0 0
    %375 = vperm.xlu0 %374, %v281
    %v376 = vpop.permute.xlu0 %375
    %377 = vset.pattern.permute.xlu0 0
    %378 = vperm.xlu0 %377, %v282
    %v379 = vpop.permute.xlu0 %378
    %380 = vset.pattern.permute.xlu0 0
    %381 = vperm.xlu0 %380, %v283
    %v382 = vpop.permute.xlu0 %381
    %383 = vset.pattern.permute.xlu0 0
    %384 = vperm.xlu0 %383, %v284
    %v385 = vpop.permute.xlu0 %384
    %386 = vset.pattern.permute.xlu0 0
    %387 = vperm.xlu0 %386, %v285
    %v388 = vpop.permute.xlu0 %387
    %389 = vset.pattern.permute.xlu0 0
    %390 = vperm.xlu0 %389, %v286
    %v391 = vpop.permute.xlu0 %390
    %392 = vset.pattern.permute.xlu0 0
    %393 = vperm.xlu0 %392, %v287
    %v394 = vpop.permute.xlu0 %393
    %395 = vset.pattern.permute.xlu0 0
    %396 = vperm.xlu0 %395, %v288
    %v397 = vpop.permute.xlu0 %396
    %398 = vset.pattern.permute.xlu0 0
    %399 = vperm.xlu0 %398, %v289
    %v400 = vpop.permute.xlu0 %399
    %401 = vset.pattern.permute.xlu0 0
    %402 = vperm.xlu0 %401, %v290
    %v403 = vpop.permute.xlu0 %402
    %404 = vset.pattern.permute.xlu0 0
    %405 = vperm.xlu0 %404, %v291
    %v406 = vpop.permute.xlu0 %405
    %407 = vset.pattern.permute.xlu0 0
    %408 = vperm.xlu0 %407, %v292
    %v409 = vpop.permute.xlu0 %408
    %410 = vset.pattern.permute.xlu0 0
    %411 = vperm.xlu0 %410, %v293
    %v412 = vpop.permute.xlu0 %411
    %413 = vset.pattern.permute.xlu0 0
    %414 = vperm.xlu0 %413, %v294
    %v415 = vpop.permute.xlu0 %414
    %416 = vset.pattern.permute.xlu0 0
    %417 = vperm.xlu0 %416, %v295
    %v418 = vpop.permute.xlu0 %417
    %419 = vset.pattern.permute.xlu0 0
    %420 = vperm.xlu0 %419, %v296
    %v421 = vpop.permute.xlu0 %420
    %422 = vset.pattern.permute.xlu0 0
    %423 = vperm.xlu0 %422, %v297
    %v424 = vpop.permute.xlu0 %423
    %425 = vset.pattern.permute.xlu0 0
    %426 = vperm.xlu0 %425, %v298
    %v427 = vpop.permute.xlu0 %426
    %428 = vset.pattern.permute.xlu0 0
    %429 = vperm.xlu0 %428, %v299
    %v430 = vpop.permute.xlu0 %429
    %v431 = vperm.slane %v337, %v301
    %v432 = vadd.s32 %v301, 4294967288
    %v433 = vperm.slane %v340, %v432
    %vm434 = vcmask 130112
    %v435 = vsel %vm434, %v433, %v431
    %v436 = vadd.s32 %v301, 4294967280
    %v437 = vperm.slane %v343, %v436
    %vm438 = vcmask 195712
    %v439 = vsel %vm438, %v437, %v435
    %v440 = vadd.s32 %v301, 4294967272
    %v441 = vperm.slane %v346, %v440
    %vm442 = vcmask 261312
    %v443 = vsel %vm442, %v441, %v439
    %v444 = vadd.s32 %v301, 4294967264
    %v445 = vperm.slane %v349, %v444
    %vm446 = vcmask 326912
    %v447 = vsel %vm446, %v445, %v443
    %v448 = vadd.s32 %v301, 4294967256
    %v449 = vperm.slane %v352, %v448
    %vm450 = vcmask 392512
    %v451 = vsel %vm450, %v449, %v447
    %v452 = vadd.s32 %v301, 4294967248
    %v453 = vperm.slane %v355, %v452
    %vm454 = vcmask 458112
    %v455 = vsel %vm454, %v453, %v451
    %v456 = vadd.s32 %v301, 4294967240
    %v457 = vperm.slane %v358, %v456
    %vm458 = vcmask 523712
    %v459 = vsel %vm458, %v457, %v455
    %v460 = vadd.s32 %v301, 4294967232
    %v461 = vperm.slane %v361, %v460
    %vm462 = vcmask 589312
    %v463 = vsel %vm462, %v461, %v459
    %v464 = vadd.s32 %v301, 4294967224
    %v465 = vperm.slane %v364, %v464
    %vm466 = vcmask 654912
    %v467 = vsel %vm466, %v465, %v463
    %v468 = vadd.s32 %v301, 4294967216
    %v469 = vperm.slane %v367, %v468
    %vm470 = vcmask 720512
    %v471 = vsel %vm470, %v469, %v467
    %v472 = vadd.s32 %v301, 4294967208
    %v473 = vperm.slane %v370, %v472
    %vm474 = vcmask 786112
    %v475 = vsel %vm474, %v473, %v471
    %v476 = vadd.s32 %v301, 4294967200
    %v477 = vperm.slane %v373, %v476
    %vm478 = vcmask 851712
    %v479 = vsel %vm478, %v477, %v475
    %v480 = vadd.s32 %v301, 4294967192
    %v481 = vperm.slane %v376, %v480
    %vm482 = vcmask 917312
    %v483 = vsel %vm482, %v481, %v479
    %v484 = vadd.s32 %v301, 4294967184
    %v485 = vperm.slane %v379, %v484
    %vm486 = vcmask 982912
    %v487 = vsel %vm486, %v485, %v483
    %v488 = vadd.s32 %v301, 4294967176
    %v489 = vperm.slane %v382, %v488
    %vm490 = vcmask 1048512
    %v491 = vsel %vm490, %v489, %v487
    %v492 = vperm.slane %v385, %v301
    %v493 = vperm.slane %v388, %v432
    %v494 = vsel %vm434, %v493, %v492
    %v495 = vperm.slane %v391, %v436
    %v496 = vsel %vm438, %v495, %v494
    %v497 = vperm.slane %v394, %v440
    %v498 = vsel %vm442, %v497, %v496
    %v499 = vperm.slane %v397, %v444
    %v500 = vsel %vm446, %v499, %v498
    %v501 = vperm.slane %v400, %v448
    %v502 = vsel %vm450, %v501, %v500
    %v503 = vperm.slane %v403, %v452
    %v504 = vsel %vm454, %v503, %v502
    %v505 = vperm.slane %v406, %v456
    %v506 = vsel %vm458, %v505, %v504
    %v507 = vperm.slane %v409, %v460
    %v508 = vsel %vm462, %v507, %v506
    %v509 = vperm.slane %v412, %v464
    %v510 = vsel %vm466, %v509, %v508
    %v511 = vperm.slane %v415, %v468
    %v512 = vsel %vm470, %v511, %v510
    %v513 = vperm.slane %v418, %v472
    %v514 = vsel %vm474, %v513, %v512
    %v515 = vperm.slane %v421, %v476
    %v516 = vsel %vm478, %v515, %v514
    %v517 = vperm.slane %v424, %v480
    %v518 = vsel %vm482, %v517, %v516
    %v519 = vperm.slane %v427, %v484
    %v520 = vsel %vm486, %v519, %v518
    %v521 = vperm.slane %v430, %v488
    %v522 = vsel %vm490, %v521, %v520
    %vm523 = vcmask 1041409
    %v524 = vsel %vm523, %v522, %v491
    %v526 = vsel %vm302, %v524, -1e+30
    %vm527 = vcmask 1041408
    %v528 = vsel %vm527, %v526, -inf
    %529 = vmax.xlane.f32.xlu0 %v528
    %v530 = vpop.xlane.xlu0 %529
    %v531 = vsub.f32 %v526, %v530
    %v532 = vmul.f32 %v531, 1.442695
    %v533 = vpow.pop %v532
    %v534 = vsel %vm527, %v533, 0.0
    %535 = vadd.xlane.f32.xlu0 %v534
    %v536 = vpop.xlane.xlu0 %535
    %v537 = vrcp.pop %v536
    %v538 = vmul.f32 %v536, %v537
    %v539 = vsub.f32 1.0, %v538
    %v540 = vmul.f32 %v537, %v539
    %v541 = vadd.f32 %v537, %v540
    %vm542 = vweird.f32 %v536
    %vm543 = vweird.f32 %v537
    %vm544 = vmor %vm542, %vm543
    %v545 = vsel %vm544, %v537, %v541
    %v546 = vand.u32 2147483647, %v536
    %vm547 = vcmp.eq.f32.partialorder %v546, 8.507059e+37
    %v548 = vand.u32 %v536, 2147483648
    %v549 = vor.u32 1.1754944e-38, %v548
    %v550 = vsel %vm547, %v549, %v545
    %v551 = vmul.f32 %v533, %v550
    %552 = vst [vmem:[#allocation3] sm:$0x3] %v551
    // Predicated region
    $region22: #{_attention_pallas.1} parent=1 // pred_check
      _
    $region23: #{_attention_pallas.1} parent=1 // pred_check_branch
      %554 = sbr.rel (0) target = $region25
    $region24: #{_attention_pallas.1} parent=1 // pred_region
      %556 = vsyncadd [#allocation4], 0
      %s558 = sshll.u32 [#allocation3], 4
      %s559 = int_to_ptr.vmem [resolvable:$true] %s558
      %s560 = sshll.u32 %s5, 4
      %s561 = int_to_ptr.hbm [resolvable:$true] %s560
      %563 = dma.vmem_to_hbm [thread:$0]  %s559, 32, %s561, [#allocation4]
    $region25: #{_attention_pallas.1} parent=1 // pred_fallthru
      _
    // Predicated region
    $region26: #{_attention_pallas.1} parent=1 // pred_check
      _
    $region27: #{_attention_pallas.1} parent=1 // pred_check_branch
      %565 = sbr.rel (0) target = $region29
    $region28: #{_attention_pallas.1} parent=1 // pred_region
      %567 = dma.done [#allocation4], 32
    $region29: #{_attention_pallas.1} parent=1 // pred_fallthru
      _
    %568 = vsyncpa [#allocation4], 1

</llo_original>
